<compile_context>
chip_gen: v5e
topology: v5e:2x2
jax: 0.10.0
libtpu: 0.0.40
codegen_flags: <defaults>
</compile_context>

<pallas_src>
import functools
import math

import jax
import jax.numpy as jnp
from jax.experimental import pallas as pl
from jax.experimental.pallas import tpu as pltpu


# ---------------------------------------------------------------------------
# helpers
# ---------------------------------------------------------------------------
def _ceil_to(x: int, m: int) -> int:
    return ((x + m - 1) // m) * m


def _pick_tile(extent: int, max_tile: int, align: int):
    """Largest tile (multiple of `align`, <= max_tile) minimizing the padded
    extent.  `extent` is assumed already aligned to `align`.
    Returns (tile, padded_extent)."""
    max_tile = max(align, (max_tile // align) * align)
    upper = min(max_tile, extent)
    best_tile, best_pad = align, _ceil_to(extent, align)
    for t in range(align, upper + 1, align):
        padded = _ceil_to(extent, t)
        if padded < best_pad or (padded == best_pad and t > best_tile):
            best_tile, best_pad = t, padded
    return best_tile, best_pad


def _largest_divisor_tile(extent: int, align: int, upper: int) -> int:
    best = align
    for t in range(align, upper + 1, align):
        if extent % t == 0:
            best = t
    return best


def _vmem_budget_bytes() -> int:
    """~75% of physical VMEM, capped at 96 MiB (v5e/v6e); ~48 MiB on v7x."""
    try:
        cap = int(pltpu.get_tpu_info().vmem_capacity_bytes)
    except Exception:
        cap = 64 * 1024 * 1024  # conservative fallback = v7x physical per-TC
    return min((cap * 3) // 4, 96 * 1024 * 1024)


def _working_set_bytes(tm, tn, tk, x_bytes, w_bytes, o_bytes, use_scratch,
                       w_bufs=3):
    total = 2 * tm * tk * x_bytes        # x tile: double buffered
    total += w_bufs * tk * tn * w_bytes  # weight tile: Buffered(3)
    total += 2 * 8 * tn * w_bytes        # bias tile (sublane padded), x2
    total += 2 * tm * tn * o_bytes       # output tile: double buffered
    if use_scratch:
        total += tm * tn * 4             # f32 accumulator scratch
    return total


def _weight_spec(tk, tn, buffer_count=3):
    idx = lambda i, j, k: (k, j)
    try:
        return pl.BlockSpec((tk, tn), idx,
                            pipeline_mode=pl.Buffered(buffer_count))
    except (TypeError, AttributeError):
        # Older jax without pipeline_mode: default double buffering.
        return pl.BlockSpec((tk, tn), idx)


# ---------------------------------------------------------------------------
# kernels
# ---------------------------------------------------------------------------
def _linear_kernel_f32out(x_ref, w_ref, b_ref, o_ref):
    """y = x @ w + b, accumulating directly into the resident f32 out block."""
    k = pl.program_id(2)

    @pl.when(k == 0)
    def _():
        o_ref[...] = jnp.broadcast_to(b_ref[...].astype(jnp.float32),
                                      o_ref.shape)

    o_ref[...] += jnp.dot(
        x_ref[...].astype(w_ref.dtype), w_ref[...],
        preferred_element_type=jnp.float32,
    )


def _linear_kernel_acc(x_ref, w_ref, b_ref, o_ref, acc_ref):
    """y = x @ w + b with an f32 VMEM accumulator (for non-f32 outputs)."""
    k = pl.program_id(2)

    @pl.when(k == 0)
    def _():
        acc_ref[...] = jnp.broadcast_to(b_ref[...].astype(jnp.float32),
                                        acc_ref.shape)

    acc_ref[...] += jnp.dot(
        x_ref[...].astype(w_ref.dtype), w_ref[...],
        preferred_element_type=jnp.float32,
    )

    @pl.when(k == pl.num_programs(2) - 1)
    def _():
        o_ref[...] = acc_ref[...].astype(o_ref.dtype)


def _linear_kernel_small(x_ref, w_ref, b_ref, o_ref):
    """Single-block fast path: whole problem fits VMEM, no grid / padding."""
    y = jnp.dot(
        x_ref[...].astype(w_ref.dtype), w_ref[...],
        preferred_element_type=jnp.float32,
    )
    o_ref[...] = (y + b_ref[...].astype(jnp.float32)).astype(o_ref.dtype)


# ---------------------------------------------------------------------------
# forward
# ---------------------------------------------------------------------------
# Below this operand-element count the work is pure launch overhead; do one
# grid-less pallas_call with full-array blocks instead of pad + tiled GEMM.
_FAST_PATH_MAX_ELEMS = 512 * 1024


@functools.partial(
    jax.jit, static_argnames=("class_num", "max_tm", "max_tn", "max_tk")
)
def our_netC_forward(x, weight_t, bias, *, class_num=None,
                     max_tm=512, max_tn=512, max_tk=2048):
    """y = x @ weight_t + bias  ==  nn.Linear(feature_dim, class_num)(x).

    x:        (B, feature_dim)
    weight_t: (feature_dim[, padded], class_num[, padded]) == torch weight.T
              (optionally pre-padded / bf16-cast once via pad_params()).
    bias:     (class_num[, padded],)
    class_num: logical class count (static); defaults to weight_t.shape[1].
    """
    B, F = x.shape
    Fw, Cw = weight_t.shape
    C = int(class_num) if class_num is not None else Cw
    Cb = bias.shape[-1]
    assert F <= Fw and C <= Cw and Cb <= Cw, "inconsistent parameter shapes"

    out_dtype = x.dtype
    x_bytes = jnp.dtype(x.dtype).itemsize
    w_bytes = jnp.dtype(weight_t.dtype).itemsize
    o_bytes = jnp.dtype(out_dtype).itemsize

    # ---- small-shape fast path: one launch, no padding, no K loop ----------
    if (B * Fw + Fw * Cw + B * Cw) <= _FAST_PATH_MAX_ELEMS:
        x_s = x if F == Fw else jnp.pad(x, ((0, 0), (0, Fw - F)))
        b_s = bias if Cb == Cw else jnp.pad(bias, (0, Cw - Cb))
        out = pl.pallas_call(
            _linear_kernel_small,
            out_shape=jax.ShapeDtypeStruct((B, Cw), out_dtype),
        )(x_s, weight_t, b_s.reshape(1, Cw))
        return out[:, :C] if Cw != C else out

    # ---- tiled GEMM path ----------------------------------------------------
    Bp0 = _ceil_to(B, 8)
    Fp0 = _ceil_to(Fw, 128)
    Cp0 = _ceil_to(Cw, 128)

    use_scratch = out_dtype != jnp.float32
    budget = _vmem_budget_bytes()

    # Shrink tile caps until the double/triple-buffered working set fits the
    # generation-specific VMEM budget (v7x: 64 MiB physical, v5e/v6e: 128 MiB).
    mt_m, mt_n, mt_k = max_tm, max_tn, max_tk
    while True:
        tm, Bp = _pick_tile(Bp0, mt_m, 8)
        tn, Cp = _pick_tile(Cp0, mt_n, 128)
        tk, Fp = _pick_tile(Fp0, mt_k, 128)
        if _working_set_bytes(tm, tn, tk, x_bytes, w_bytes, o_bytes,
                              use_scratch) <= budget:
            break
        if mt_k > 128:
            mt_k //= 2
        elif mt_n > 128:
            mt_n //= 2
        elif mt_m > 8:
            mt_m //= 2
        else:
            break  # minimal tiles; always fits in practice

    # Guarantee >= 2 "parallel" output blocks so v7x's second TC isn't idle.
    if (Bp // tm) * (Cp // tn) < 2:
        if Cp >= 256:
            tn = _largest_divisor_tile(Cp, 128, Cp // 2)
        elif Bp >= 16:
            tm = _largest_divisor_tile(Bp, 8, Bp // 2)

    # Per-call padding only for x; parameters are padded only if the caller
    # did not pre-pad them with pad_params().
    x_p = x if (B, F) == (Bp, Fp) else jnp.pad(x, ((0, Bp - B), (0, Fp - F)))
    w_p = (weight_t if (Fw, Cw) == (Fp, Cp)
           else jnp.pad(weight_t, ((0, Fp - Fw), (0, Cp - Cw))))
    b_p = bias if Cb == Cp else jnp.pad(bias, (0, Cp - Cb))
    b_p = b_p.reshape(1, Cp)

    grid = (Bp // tm, Cp // tn, Fp // tk)
    kernel = _linear_kernel_acc if use_scratch else _linear_kernel_f32out
    scratch = [pltpu.VMEM((tm, tn), jnp.float32)] if use_scratch else []

    out_padded = pl.pallas_call(
        kernel,
        out_shape=jax.ShapeDtypeStruct((Bp, Cp), out_dtype),
        grid=grid,
        in_specs=[
            pl.BlockSpec((tm, tk), lambda i, j, k: (i, k)),   # x tile
            _weight_spec(tk, tn),                             # W tile, 3-deep
            pl.BlockSpec((1, tn), lambda i, j, k: (0, j)),    # bias (k-invar.)
        ],
        out_specs=pl.BlockSpec((tm, tn), lambda i, j, k: (i, j)),
        scratch_shapes=scratch,
        compiler_params=pltpu.CompilerParams(
            dimension_semantics=("parallel", "parallel", "arbitrary"),
            vmem_limit_bytes=budget,
        ),
        cost_estimate=pl.CostEstimate(
            flops=2 * Bp * Fp * Cp,
            transcendentals=0,
            bytes_accessed=(
                Bp * Fp * (Cp // tn) * x_bytes     # x re-read per class tile
                + Fp * Cp * (Bp // tm) * w_bytes   # W re-read per batch tile
                + Bp * Cp * o_bytes
                + Cp * w_bytes
            ),
        ),
    )(x_p, w_p, b_p)

    return out_padded[:B, :C]


# ---------------------------------------------------------------------------
# parameter helpers
# ---------------------------------------------------------------------------
def init_our_netC_params(key, class_num, feature_dim, dtype=jnp.float32):
    """nn.Linear-default init U(-1/sqrt(fan_in), 1/sqrt(fan_in)); weight is
    stored transposed (feature_dim, class_num) so the kernel does x @ W.T."""
    k_w, k_b = jax.random.split(key)
    bound = 1.0 / math.sqrt(feature_dim)
    weight = jax.random.uniform(k_w, (class_num, feature_dim), jnp.float32,
                                minval=-bound, maxval=bound)
    bias = jax.random.uniform(k_b, (class_num,), jnp.float32,
                              minval=-bound, maxval=bound)
    return weight.T.astype(dtype), bias.astype(dtype)


def pad_params(weight_t, bias, dtype=None):
    """One-time (init-time) padding of the Linear parameters to 128-aligned
    extents, optionally casting to bf16.  Removes the per-forward pad ops and
    (with dtype=jnp.bfloat16) halves the weight HBM stream while keeping f32
    accumulation in the kernel."""
    F, C = weight_t.shape
    Fp, Cp = _ceil_to(F, 128), _ceil_to(C, 128)
    w = jnp.pad(weight_t, ((0, Fp - F), (0, Cp - C)))
    b = jnp.pad(bias, (0, Cp - C))
    if dtype is not None:
        w, b = w.astype(dtype), b.astype(dtype)
    return w, b


# ---------------------------------------------------------------------------
# demo / self-test
# ---------------------------------------------------------------------------
if __name__ == "__main__":
    key = jax.random.PRNGKey(0)
    k_x, k_p, k_x2, k_p2 = jax.random.split(key, 4)

    # --- tiny classifier head (module's natural scale): fast single-block path
    batch, feature_dim, class_num = 8, 32, 10
    x = jax.random.normal(k_x, (batch, feature_dim), dtype=jnp.float32)
    weight_t, bias = init_our_netC_params(k_p, class_num, feature_dim)

    y = jax.block_until_ready(our_netC_forward(x, weight_t, bias))
    y_ref = x @ weight_t + bias[None, :]
    assert y.shape == (batch, class_num)
    assert jnp.allclose(y, y_ref, atol=1e-5, rtol=1e-5)

    # --- larger shapes: tiled K-reduction path with pre-padded f32 params ----
    batch2, feature_dim2, class_num2 = 512, 768, 300
    x2 = jax.random.normal(k_x2, (batch2, feature_dim2), dtype=jnp.float32)
    w2_t, b2 = init_our_netC_params(k_p2, class_num2, feature_dim2)
    w2_p, b2_p = pad_params(w2_t, b2)  # pad once, outside the per-call forward

    y2 = jax.block_until_ready(
        our_netC_forward(x2, w2_p, b2_p, class_num=class_num2,
                         max_tm=256, max_tn=128, max_tk=256))
    y2_ref = x2 @ w2_t + b2[None, :]
    assert y2.shape == (batch2, class_num2)
    assert jnp.allclose(y2, y2_ref, atol=1e-4, rtol=1e-4)

    # --- bf16 parameter path (native MXU dtype, halved weight HBM stream) ----
    w3_p, b3_p = pad_params(w2_t, b2, dtype=jnp.bfloat16)
    y3 = jax.block_until_ready(
        our_netC_forward(x2.astype(jnp.bfloat16), w3_p, b3_p,
                         class_num=class_num2,
                         max_tm=256, max_tn=128, max_tk=256))
    assert y3.shape == (batch2, class_num2)
    assert jnp.allclose(y3.astype(jnp.float32), y2_ref, atol=3e-2, rtol=3e-2)

    print("KERNEL_OK")
</pallas_src>

<mosaic_0001>
module attributes {stable_mosaic.version = 11 : i64} {
  func.func @_linear_kernel_small(%arg0: memref<8x32xf32, #tpu.memory_space<vmem>>, %arg1: memref<32x10xf32, #tpu.memory_space<vmem>>, %arg2: memref<1x10xf32, #tpu.memory_space<vmem>>, %arg3: memref<8x10xf32, #tpu.memory_space<vmem>>) attributes {dimension_semantics = [], scalar_prefetch = 0 : i64, scratch_operands = 0 : i64, tpu.core_type = #tpu.core_type<tc>} {
    %c0 = arith.constant 0 : index
    %c0_0 = arith.constant 0 : index
    %0 = vector.load %arg0[%c0, %c0_0] : memref<8x32xf32, #tpu.memory_space<vmem>>, vector<8x32xf32>
    %c0_1 = arith.constant 0 : index
    %c0_2 = arith.constant 0 : index
    %1 = vector.load %arg1[%c0_1, %c0_2] : memref<32x10xf32, #tpu.memory_space<vmem>>, vector<32x10xf32>
    %cst = arith.constant dense<0.000000e+00> : vector<8x10xf32>
    %2 = tpu.matmul %0, %1, %cst {dimension_numbers = #tpu.dot_dimension_numbers<[1], [0], [0], [1], [0, 0, 1, 1], [], []>} : vector<8x32xf32>, vector<32x10xf32>, vector<8x10xf32> -> vector<8x10xf32>
    %c0_3 = arith.constant 0 : index
    %c0_4 = arith.constant 0 : index
    %3 = vector.load %arg2[%c0_3, %c0_4] : memref<1x10xf32, #tpu.memory_space<vmem>>, vector<1x10xf32>
    %4 = vector.broadcast %3 : vector<1x10xf32> to vector<8x10xf32>
    %5 = arith.addf %2, %4 : vector<8x10xf32>
    %c0_5 = arith.constant 0 : index
    %c0_6 = arith.constant 0 : index
    %6 = vector.load %arg3[%c0_5, %c0_6] : memref<8x10xf32, #tpu.memory_space<vmem>>, vector<8x10xf32>
    tpu.vector_store %arg3[%c0_5, %c0_6], %5 {strides = array<i32>} : memref<8x10xf32, #tpu.memory_space<vmem>>, vector<8x10xf32>,
    return
  }
}

</mosaic_0001>

<llo_original>
// kernel: our_netC_forward.1
$region0: #{our_netC_forward.1}
  #allocation0 [shape = 'u32[]', space=smem, size = 0x4, offset = 0x4, fixed_abs, tag = 'smem constant byte address 0x4 - core index']
  #allocation1 [shape = 'u32[72,128]{1,0:T(1,128)}', space=vmem, size = 0x9000, scoped, tag = 'internal scratch']
  %s0 = inlined_call_operand.vmem [shape: f32[8,32], index: 0, kind: input, shape index: {}]
  %s1 = inlined_call_operand.vmem [shape: f32[32,10], index: 1, kind: input, shape index: {}]
  %s2 = inlined_call_operand.vmem [shape: f32[1,10], index: 2, kind: input, shape index: {}]
  %s3 = inlined_call_operand.hbm [shape: f32[8,10], index: 3, kind: output, shape index: {}]
  %s4 = sld [smem:[#allocation0]]
  $region22: #{our_netC_forward.1} parent=0
    _
  %s6 = ssub.s32 1, %s4
  %s7 = scalar_select 0, %s6, %s4
  $region1: #{our_netC_forward.1} parent=0
    #allocation2 [shape = 'u8[4096]{0}', space=vmem, size = 0x1000, scoped, tag = 'output window, operand 0, single buffered']
    #allocation3 [shape = 's32[1]{0}', space=sflag, size = 0x4, scoped, tag = 'scoped memory for our_netC_forward.1']
    %8 = vsyncpa [#allocation3], 0
    // Predicated region
    $region2: #{our_netC_forward.1} parent=1 // pred_check
      _
    $region3: #{our_netC_forward.1} parent=1 // pred_check_branch
      %10 = sbr.rel (0) target = $region5
    $region4: #{our_netC_forward.1} parent=1 // pred_region
      _
    $region5: #{our_netC_forward.1} parent=1 // pred_fallthru
      _
    // Predicated region
    $region6: #{our_netC_forward.1} parent=1 // pred_check
      _
    $region7: #{our_netC_forward.1} parent=1 // pred_check_branch
      %12 = sbr.rel (0) target = $region9
    $region8: #{our_netC_forward.1} parent=1 // pred_region
      _
    $region9: #{our_netC_forward.1} parent=1 // pred_fallthru
      _
    // Predicated region
    $region10: #{our_netC_forward.1} parent=1 // pred_check
      _
    $region11: #{our_netC_forward.1} parent=1 // pred_check_branch
      %14 = sbr.rel (0) target = $region13
    $region12: #{our_netC_forward.1} parent=1 // pred_region
      _
    $region13: #{our_netC_forward.1} parent=1 // pred_fallthru
      _
    %v15 = vld [vmem:[%s0] sm:$0xff]
    %v16 = vld [vmem:[%s1] sm:$0xff]
    %v17 = vld [vmem:[%s1 + $0x8] sm:$0xff]
    %v18 = vld [vmem:[%s1 + $0x10] sm:$0xff]
    %v19 = vld [vmem:[%s1 + $0x18] sm:$0xff]
    %v20 = vld [vmem:[%s2] sm:$0x1]
    %v22 = vperm.slane %v20, 0
    %vm24 = vcmask 261120
    %v26 = vsel %vm24, %v15, 0
    %28 = vmatpush.msra.mxu0 0.0
    %29 = vmatpush.msra.mxu0 0.0
    %30 = vmatpush.msra.mxu0 0.0
    %31 = vmatpush.msra.mxu0 0.0
    %32 = vmatpush.msra.mxu0 0.0
    %33 = vmatpush.msra.mxu0 0.0
    %34 = vmatpush.msra.mxu0 0.0
    %35 = vmatpush.msra.mxu0 0.0
    %36 = vmatpush.msra.mxu0 0.0
    %37 = vmatpush.msra.mxu0 0.0
    %38 = vmatpush.msra.mxu0 0.0
    %39 = vmatpush.msra.mxu0 0.0
    %40 = vmatpush.msra.mxu0 %v19
    %41 = vmatpush.msra.mxu0 %v18
    %42 = vmatpush.msra.mxu0 %v17
    %43 = vmatpush.msra.mxu0 %v16
    %44 = vmatmul.f32.gmra.mxu0 %v26
    %v45 = vpop.f32.mrf.mxu0
    %v46 = vadd.f32 %v22, %v45
    %47 = vdwg.mxu0
    %vm48 = vcmask 80896
    %49 = vst.msk [vmem:[#allocation2] sm:$0xff] %vm48, %v46
    // Predicated region
    $region14: #{our_netC_forward.1} parent=1 // pred_check
      _
    $region15: #{our_netC_forward.1} parent=1 // pred_check_branch
      %51 = sbr.rel (0) target = $region17
    $region16: #{our_netC_forward.1} parent=1 // pred_region
      %53 = vsyncadd [#allocation3], 0
      %s55 = sshll.u32 [#allocation2], 4
      %s56 = int_to_ptr.vmem [resolvable:$true] %s55
      %s57 = sshll.u32 %s3, 4
      %s58 = int_to_ptr.hbm [resolvable:$true] %s57
      %60 = dma.vmem_to_hbm [thread:$0]  %s56, 128, %s58, [#allocation3]
    $region17: #{our_netC_forward.1} parent=1 // pred_fallthru
      _
    // Predicated region
    $region18: #{our_netC_forward.1} parent=1 // pred_check
      _
    $region19: #{our_netC_forward.1} parent=1 // pred_check_branch
      %62 = sbr.rel (0) target = $region21
    $region20: #{our_netC_forward.1} parent=1 // pred_region
      %64 = dma.done [#allocation3], 128
    $region21: #{our_netC_forward.1} parent=1 // pred_fallthru
      _
    %65 = vsyncpa [#allocation3], 1

</llo_original>
